<compile_context>
chip_gen: v6e
topology: v6e:2x2x1
jax: 0.10.0
libtpu: 0.0.40
codegen_flags: <defaults>
</compile_context>

<pallas_src>
import numpy as np
import jax
import jax.numpy as jnp
from jax.experimental import pallas as pl
from jax.experimental.pallas import tpu as pltpu

BIN_SIZES = (1, 2, 3, 6)   # AvgPool2d kernel sizes (PyTorch default stride=kernel)
NCLS_PAD = 8               # pad classes to one full sublane group


def build_pool_upsample_factors(H, W, bins_gt1):
    """Factored pool+upsample operators for bins s>1, concatenated over bins.

    P[r*W+c, m] = 1/s^2 if flat pixel (r,c) is in the AvgPool2d(s) window of
                  pooled cell m (stride = kernel, floor crop at the edges).
    U[m, i*W+j] = 1 if PyTorch nearest-upsample src of output (i,j) is cell m
                  (src = floor(dst * in / out)).
    mask[b, m]  = 1 if pooled cell m belongs to bin b (block-diagonal select).
    """
    HW = H * W
    M = sum((H // s) * (W // s) for s in bins_gt1)
    Mp = ((M + 7) // 8) * 8                        # sublane-pad (zero rows/cols)
    P = np.zeros((HW, Mp), np.float32)
    U = np.zeros((Mp, HW), np.float32)
    mask = np.zeros((len(bins_gt1), Mp), np.float32)
    off = 0
    for b, s in enumerate(bins_gt1):
        hs, ws = H // s, W // s
        inv = 1.0 / float(s * s)
        for a in range(hs):
            for bc in range(ws):
                m = off + a * ws + bc
                for r in range(a * s, a * s + s):
                    for c in range(bc * s, bc * s + s):
                        P[r * W + c, m] = inv
        for i in range(H):
            a = (i * hs) // H
            for j in range(W):
                bc = (j * ws) // W
                U[off + a * ws + bc, i * W + j] = 1.0
        mask[b, off:off + hs * ws] = 1.0
        off += hs * ws
    return P, U, mask


# ---------------- fused Pallas kernel ----------------

def pspnet_kernel(x_ref, wb_ref, bb_ref, wtop_ref, wpc1_ref, pcat_ref,
                  mask_ref, wpcexp_ref, ucat_ref, beff_ref, out_ref):
    n_bins = len(BIN_SIZES)

    # --- synthetic CNN backbone: 1x1 conv + ReLU (bf16 MXU operands, f32 acc).
    # TODO(synk): original cnn_backbone is an arbitrary external module; a
    # synthetic 1x1 conv + ReLU that preserves spatial size stands in for it.
    x = x_ref[0].astype(jnp.bfloat16)                                    # (C_in, HW)
    fm = jnp.dot(wb_ref[...], x, preferred_element_type=jnp.float32)
    fm = jnp.maximum(fm + bb_ref[...], 0.0)                              # (C_feat, HW) f32

    # --- batched 1x1 convs: rows 0..7 = padded prediction-feature part,
    #     rows 8..11 = PPM convs for bins (1,2,3,6) (pool and 1x1-conv commute).
    t = jnp.dot(wtop_ref[...], fm.astype(jnp.bfloat16),
                preferred_element_type=jnp.float32)                      # (12, HW)
    pred = t[0:NCLS_PAD, :]                                              # (8, HW)
    y1 = t[NCLS_PAD:NCLS_PAD + 1, :]                                     # bin s=1 map
    y_rest = t[NCLS_PAD + 1:NCLS_PAD + n_bins, :]                        # bins 2,3,6

    # --- pooling for bins s>1: one batched skinny matmul + block-diag select.
    pooled = jnp.dot(y_rest, pcat_ref[...],
                     preferred_element_type=jnp.float32)                 # (3, Mp)
    z = jnp.sum(pooled * mask_ref[...], axis=0, keepdims=True)           # (1, Mp)

    # --- context contribution folded analytically:
    #   sum_s w_pc[:,s] (x) upsample_s(pool_s(y_s))
    #     = (w_pc_exp * z) @ U_cat   (bins > 1)  +  w_pc[:,0] (x) y1   (bin 1)
    ctx_rest = jnp.dot(wpcexp_ref[...] * z, ucat_ref[...],
                       preferred_element_type=jnp.float32)               # (8, HW)

    out_ref[0] = pred + wpc1_ref[...] * y1 + ctx_rest + beff_ref[...]


# ---------------- wrapper ----------------

def pspnet_forward(x, wb, bb, w_ppm, b_ppm, w_pf, w_pc, b_pred, num_classes):
    assert BIN_SIZES[0] == 1
    N, C_in, H, W = x.shape
    HW = H * W
    C_feat = wb.shape[0]
    n_bins = len(BIN_SIZES)
    bins_gt1 = BIN_SIZES[1:]
    n_gt1 = len(bins_gt1)

    # ---- host-side (static) parameter prep ----
    P, U, mask = build_pool_upsample_factors(H, W, bins_gt1)
    Mp = P.shape[1]

    pad = NCLS_PAD - num_classes
    w_pf_p = jnp.pad(w_pf, ((0, pad), (0, 0)))
    w_pc_p = jnp.pad(w_pc, ((0, pad), (0, 0)))
    b_pred_p = jnp.pad(b_pred, (0, pad))

    w_top = jnp.concatenate([w_pf_p, w_ppm], axis=0).astype(jnp.bfloat16)   # (12, C_feat)
    wpc1 = w_pc_p[:, 0:1]                                                   # (8, 1)
    wpc_exp = jnp.dot(w_pc_p[:, 1:], jnp.asarray(mask))                     # (8, Mp)
    b_eff = (b_pred_p + jnp.dot(w_pc_p, b_ppm)).reshape(NCLS_PAD, 1)        # (8, 1)

    x_flat = x.reshape(N, C_in, HW)
    n_rows = NCLS_PAD + n_bins   # 12

    in_specs = [
        pl.BlockSpec((1, C_in, HW), lambda n: (n, 0, 0)),        # x (per image)
        pl.BlockSpec((C_feat, C_in), lambda n: (0, 0)),          # backbone weight (bf16)
        pl.BlockSpec((C_feat, 1), lambda n: (0, 0)),             # backbone bias
        pl.BlockSpec((n_rows, C_feat), lambda n: (0, 0)),        # stacked pred/PPM weights
        pl.BlockSpec((NCLS_PAD, 1), lambda n: (0, 0)),           # w_pc[:, 0]
        pl.BlockSpec((HW, Mp), lambda n: (0, 0)),                # pooling factor P
        pl.BlockSpec((n_gt1, Mp), lambda n: (0, 0)),             # block-diag mask
        pl.BlockSpec((NCLS_PAD, Mp), lambda n: (0, 0)),          # expanded w_pc
        pl.BlockSpec((Mp, HW), lambda n: (0, 0)),                # upsample factor U
        pl.BlockSpec((NCLS_PAD, 1), lambda n: (0, 0)),           # folded bias b_eff
    ]

    out = pl.pallas_call(
        pspnet_kernel,
        out_shape=jax.ShapeDtypeStruct((N, NCLS_PAD, HW), jnp.float32),
        grid_spec=pltpu.PrefetchScalarGridSpec(
            num_scalar_prefetch=0,
            grid=(N,),
            in_specs=in_specs,
            out_specs=pl.BlockSpec((1, NCLS_PAD, HW), lambda n: (n, 0, 0)),
        ),
        compiler_params=pltpu.CompilerParams(
            dimension_semantics=("parallel",),
            # Tune per generation: push toward ~100 MiB on v5e/v6e, keep
            # <= ~48 MiB on v7x (64 MiB physical VMEM).
            vmem_limit_bytes=32 * 1024 * 1024,
        ),
    )(x_flat, wb.astype(jnp.bfloat16), bb.reshape(C_feat, 1), w_top, wpc1,
      jnp.asarray(P), jnp.asarray(mask), wpc_exp, jnp.asarray(U), b_eff)

    # TODO(synk): at realistic feature-map sizes add a second grid axis tiling
    # HW (two-pass pooling with per-bin scalar scratch) so v7x's 64 MiB VMEM
    # holds the feature-map tile; unnecessary at this toy size.

    # drop class padding, restore NCHW
    return out[:, :num_classes, :].reshape(N, num_classes, H, W)


# ---------------- pure-JAX reference (PyTorch semantics, NCHW, f32) ----------------

def ref_pspnet(x, wb, bb, w_ppm, b_ppm, w_pf, w_pc, b_pred, H, W):
    fm = jnp.einsum('oc,nchw->nohw', wb, x) + bb[None, :, None, None]
    fm = jnp.maximum(fm, 0.0)
    N, C = fm.shape[0], fm.shape[1]
    ctx = []
    for si, s in enumerate(BIN_SIZES):
        hs, ws = H // s, W // s
        pooled = fm[:, :, :hs * s, :ws * s].reshape(N, C, hs, s, ws, s).mean(axis=(3, 5))
        conv = jnp.einsum('c,nchw->nhw', w_ppm[si], pooled) + b_ppm[si]
        ri = jnp.arange(H) * hs // H
        ci = jnp.arange(W) * ws // W
        up = conv[:, ri][:, :, ci]
        ctx.append(up[:, None, :, :])
    cat = jnp.concatenate([fm] + ctx, axis=1)
    w_full = jnp.concatenate([w_pf, w_pc], axis=1)
    return jnp.einsum('oc,nchw->nohw', w_full, cat) + b_pred[None, :, None, None]


if __name__ == "__main__":
    N, C_in, H, W = 2, 3, 16, 16
    C_feat, num_classes = 8, 5
    n_bins = len(BIN_SIZES)

    key = jax.random.PRNGKey(0)
    ks = jax.random.split(key, 8)
    x = jax.random.normal(ks[0], (N, C_in, H, W), jnp.float32)
    wb = 0.1 * jax.random.normal(ks[1], (C_feat, C_in), jnp.float32)
    bb = 0.1 * jax.random.normal(ks[2], (C_feat,), jnp.float32)
    w_ppm = 0.1 * jax.random.normal(ks[3], (n_bins, C_feat), jnp.float32)
    b_ppm = 0.1 * jax.random.normal(ks[4], (n_bins,), jnp.float32)
    w_pf = 0.1 * jax.random.normal(ks[5], (num_classes, C_feat), jnp.float32)
    w_pc = 0.1 * jax.random.normal(ks[6], (num_classes, n_bins), jnp.float32)
    b_pred = 0.1 * jax.random.normal(ks[7], (num_classes,), jnp.float32)

    out = pspnet_forward(x, wb, bb, w_ppm, b_ppm, w_pf, w_pc, b_pred, num_classes)
    out = jax.block_until_ready(out)

    ref = ref_pspnet(x, wb, bb, w_ppm, b_ppm, w_pf, w_pc, b_pred, H, W)
    np.testing.assert_allclose(np.asarray(out), np.asarray(ref), rtol=2e-2, atol=2e-2)
    print("KERNEL_OK")
</pallas_src>

<mosaic_0001>
module attributes {stable_mosaic.version = 11 : i64} {
  func.func @pspnet_kernel(%arg0: i32, %arg1: memref<1x3x256xf32, #tpu.memory_space<vmem>>, %arg2: memref<8x3xbf16, #tpu.memory_space<vmem>>, %arg3: memref<8x1xf32, #tpu.memory_space<vmem>>, %arg4: memref<12x8xbf16, #tpu.memory_space<vmem>>, %arg5: memref<8x1xf32, #tpu.memory_space<vmem>>, %arg6: memref<256x96xf32, #tpu.memory_space<vmem>>, %arg7: memref<3x96xf32, #tpu.memory_space<vmem>>, %arg8: memref<8x96xf32, #tpu.memory_space<vmem>>, %arg9: memref<96x256xf32, #tpu.memory_space<vmem>>, %arg10: memref<8x1xf32, #tpu.memory_space<vmem>>, %arg11: memref<1x8x256xf32, #tpu.memory_space<vmem>>) attributes {dimension_semantics = [#tpu.dimension_semantics<parallel>], iteration_bounds = array<i64: 2>, scalar_prefetch = 0 : i64, scratch_operands = 0 : i64, tpu.core_type = #tpu.core_type<tc>, window_params = [{transform_indices = @transform_0, window_bounds = array<i64: 1, 3, 256>}, {pipeline_mode = #tpu.pipeline_mode<synchronous>, transform_indices = @transform_1, window_bounds = array<i64: 8, 3>}, {pipeline_mode = #tpu.pipeline_mode<synchronous>, transform_indices = @transform_2, window_bounds = array<i64: 8, 1>}, {pipeline_mode = #tpu.pipeline_mode<synchronous>, transform_indices = @transform_3, window_bounds = array<i64: 12, 8>}, {pipeline_mode = #tpu.pipeline_mode<synchronous>, transform_indices = @transform_4, window_bounds = array<i64: 8, 1>}, {pipeline_mode = #tpu.pipeline_mode<synchronous>, transform_indices = @transform_5, window_bounds = array<i64: 256, 96>}, {pipeline_mode = #tpu.pipeline_mode<synchronous>, transform_indices = @transform_6, window_bounds = array<i64: 3, 96>}, {pipeline_mode = #tpu.pipeline_mode<synchronous>, transform_indices = @transform_7, window_bounds = array<i64: 8, 96>}, {pipeline_mode = #tpu.pipeline_mode<synchronous>, transform_indices = @transform_8, window_bounds = array<i64: 96, 256>}, {pipeline_mode = #tpu.pipeline_mode<synchronous>, transform_indices = @transform_9, window_bounds = array<i64: 8, 1>}, {transform_indices = @transform_10, window_bounds = array<i64: 1, 8, 256>}]} {
    %c0 = arith.constant 0 : index
    %c0_0 = arith.constant 0 : index
    %c0_1 = arith.constant 0 : index
    %0 = vector.load %arg1[%c0, %c0_0, %c0_1] : memref<1x3x256xf32, #tpu.memory_space<vmem>>, vector<1x3x256xf32>
    %1 = vector.shape_cast %0 : vector<1x3x256xf32> to vector<3x256xf32>
    %2 = arith.truncf %1 : vector<3x256xf32> to vector<3x256xbf16>
    %c0_2 = arith.constant 0 : index
    %c0_3 = arith.constant 0 : index
    %3 = vector.load %arg2[%c0_2, %c0_3] : memref<8x3xbf16, #tpu.memory_space<vmem>>, vector<8x3xbf16>
    %cst = arith.constant dense<0.000000e+00> : vector<8x256xf32>
    %4 = tpu.matmul %3, %2, %cst {dimension_numbers = #tpu.dot_dimension_numbers<[1], [0], [0], [1], [0, 0, 1, 1], [], []>} : vector<8x3xbf16>, vector<3x256xbf16>, vector<8x256xf32> -> vector<8x256xf32>
    %c0_4 = arith.constant 0 : index
    %c0_5 = arith.constant 0 : index
    %5 = vector.load %arg3[%c0_4, %c0_5] : memref<8x1xf32, #tpu.memory_space<vmem>>, vector<8x1xf32>
    %6 = vector.broadcast %5 : vector<8x1xf32> to vector<8x256xf32>
    %7 = arith.addf %4, %6 : vector<8x256xf32>
    %cst_6 = arith.constant 0.000000e+00 : f32
    %8 = vector.broadcast %cst_6 : f32 to vector<8x256xf32>
    %9 = arith.maximumf %7, %8 : vector<8x256xf32>
    %c0_7 = arith.constant 0 : index
    %c0_8 = arith.constant 0 : index
    %10 = vector.load %arg4[%c0_7, %c0_8] : memref<12x8xbf16, #tpu.memory_space<vmem>>, vector<12x8xbf16>
    %11 = arith.truncf %9 : vector<8x256xf32> to vector<8x256xbf16>
    %cst_9 = arith.constant dense<0.000000e+00> : vector<12x256xf32>
    %12 = tpu.matmul %10, %11, %cst_9 {dimension_numbers = #tpu.dot_dimension_numbers<[1], [0], [0], [1], [0, 0, 1, 1], [], []>} : vector<12x8xbf16>, vector<8x256xbf16>, vector<12x256xf32> -> vector<12x256xf32>
    %13 = vector.extract_strided_slice %12 {offsets = [0, 0], sizes = [8, 256], strides = [1, 1]} : vector<12x256xf32> to vector<8x256xf32>
    %14 = vector.extract_strided_slice %12 {offsets = [8, 0], sizes = [1, 256], strides = [1, 1]} : vector<12x256xf32> to vector<1x256xf32>
    %15 = vector.extract_strided_slice %12 {offsets = [9, 0], sizes = [3, 256], strides = [1, 1]} : vector<12x256xf32> to vector<3x256xf32>
    %c0_10 = arith.constant 0 : index
    %c0_11 = arith.constant 0 : index
    %16 = vector.load %arg6[%c0_10, %c0_11] : memref<256x96xf32, #tpu.memory_space<vmem>>, vector<256x96xf32>
    %cst_12 = arith.constant dense<0.000000e+00> : vector<3x96xf32>
    %17 = tpu.matmul %15, %16, %cst_12 {dimension_numbers = #tpu.dot_dimension_numbers<[1], [0], [0], [1], [0, 0, 1, 1], [], []>} : vector<3x256xf32>, vector<256x96xf32>, vector<3x96xf32> -> vector<3x96xf32>
    %c0_13 = arith.constant 0 : index
    %c0_14 = arith.constant 0 : index
    %18 = vector.load %arg7[%c0_13, %c0_14] : memref<3x96xf32, #tpu.memory_space<vmem>>, vector<3x96xf32>
    %19 = arith.mulf %17, %18 : vector<3x96xf32>
    %cst_15 = arith.constant dense<0.000000e+00> : vector<96xf32>
    %20 = vector.multi_reduction <add>, %19, %cst_15 [0] : vector<3x96xf32> to vector<96xf32>
    %21 = vector.shape_cast %20 : vector<96xf32> to vector<1x96xf32>
    %c0_16 = arith.constant 0 : index
    %c0_17 = arith.constant 0 : index
    %22 = vector.load %arg8[%c0_16, %c0_17] : memref<8x96xf32, #tpu.memory_space<vmem>>, vector<8x96xf32>
    %23 = vector.broadcast %21 : vector<1x96xf32> to vector<8x96xf32>
    %24 = arith.mulf %22, %23 : vector<8x96xf32>
    %c0_18 = arith.constant 0 : index
    %c0_19 = arith.constant 0 : index
    %25 = vector.load %arg9[%c0_18, %c0_19] : memref<96x256xf32, #tpu.memory_space<vmem>>, vector<96x256xf32>
    %cst_20 = arith.constant dense<0.000000e+00> : vector<8x256xf32>
    %26 = tpu.matmul %24, %25, %cst_20 {dimension_numbers = #tpu.dot_dimension_numbers<[1], [0], [0], [1], [0, 0, 1, 1], [], []>} : vector<8x96xf32>, vector<96x256xf32>, vector<8x256xf32> -> vector<8x256xf32>
    %c0_21 = arith.constant 0 : index
    %c0_22 = arith.constant 0 : index
    %27 = vector.load %arg5[%c0_21, %c0_22] : memref<8x1xf32, #tpu.memory_space<vmem>>, vector<8x1xf32>
    %28 = vector.broadcast %27 : vector<8x1xf32> to vector<8x256xf32>
    %29 = vector.broadcast %14 : vector<1x256xf32> to vector<8x256xf32>
    %30 = arith.mulf %28, %29 : vector<8x256xf32>
    %31 = arith.addf %13, %30 : vector<8x256xf32>
    %32 = arith.addf %31, %26 : vector<8x256xf32>
    %c0_23 = arith.constant 0 : index
    %c0_24 = arith.constant 0 : index
    %33 = vector.load %arg10[%c0_23, %c0_24] : memref<8x1xf32, #tpu.memory_space<vmem>>, vector<8x1xf32>
    %34 = vector.broadcast %33 : vector<8x1xf32> to vector<8x256xf32>
    %35 = arith.addf %32, %34 : vector<8x256xf32>
    %c0_25 = arith.constant 0 : index
    %c0_26 = arith.constant 0 : index
    %c0_27 = arith.constant 0 : index
    %36 = vector.load %arg11[%c0_25, %c0_26, %c0_27] : memref<1x8x256xf32, #tpu.memory_space<vmem>>, vector<1x8x256xf32>
    %37 = vector.shape_cast %36 : vector<1x8x256xf32> to vector<8x256xf32>
    %38 = vector.shape_cast %35 : vector<8x256xf32> to vector<1x8x256xf32>
    tpu.vector_store %arg11[%c0_25, %c0_26, %c0_27], %38 {strides = array<i32>} : memref<1x8x256xf32, #tpu.memory_space<vmem>>, vector<1x8x256xf32>,
    return
  }
  func.func @transform_0(%arg0: i32) -> (i32, i32, i32) {
    %c0_i32 = arith.constant 0 : i32
    %c0_i32_0 = arith.constant 0 : i32
    %c0_i32_1 = arith.constant 0 : i32
    return %arg0, %c0_i32, %c0_i32_0 : i32, i32, i32
  }
  func.func @transform_1(%arg0: i32) -> (i32, i32) {
    %c0_i32 = arith.constant 0 : i32
    %c0_i32_0 = arith.constant 0 : i32
    %c0_i32_1 = arith.constant 0 : i32
    return %c0_i32, %c0_i32_0 : i32, i32
  }
  func.func @transform_2(%arg0: i32) -> (i32, i32) {
    %c0_i32 = arith.constant 0 : i32
    %c0_i32_0 = arith.constant 0 : i32
    %c0_i32_1 = arith.constant 0 : i32
    return %c0_i32, %c0_i32_0 : i32, i32
  }
  func.func @transform_3(%arg0: i32) -> (i32, i32) {
    %c0_i32 = arith.constant 0 : i32
    %c0_i32_0 = arith.constant 0 : i32
    %c0_i32_1 = arith.constant 0 : i32
    return %c0_i32, %c0_i32_0 : i32, i32
  }
  func.func @transform_4(%arg0: i32) -> (i32, i32) {
    %c0_i32 = arith.constant 0 : i32
    %c0_i32_0 = arith.constant 0 : i32
    %c0_i32_1 = arith.constant 0 : i32
    return %c0_i32, %c0_i32_0 : i32, i32
  }
  func.func @transform_5(%arg0: i32) -> (i32, i32) {
    %c0_i32 = arith.constant 0 : i32
    %c0_i32_0 = arith.constant 0 : i32
    %c0_i32_1 = arith.constant 0 : i32
    return %c0_i32, %c0_i32_0 : i32, i32
  }
  func.func @transform_6(%arg0: i32) -> (i32, i32) {
    %c0_i32 = arith.constant 0 : i32
    %c0_i32_0 = arith.constant 0 : i32
    %c0_i32_1 = arith.constant 0 : i32
    return %c0_i32, %c0_i32_0 : i32, i32
  }
  func.func @transform_7(%arg0: i32) -> (i32, i32) {
    %c0_i32 = arith.constant 0 : i32
    %c0_i32_0 = arith.constant 0 : i32
    %c0_i32_1 = arith.constant 0 : i32
    return %c0_i32, %c0_i32_0 : i32, i32
  }
  func.func @transform_8(%arg0: i32) -> (i32, i32) {
    %c0_i32 = arith.constant 0 : i32
    %c0_i32_0 = arith.constant 0 : i32
    %c0_i32_1 = arith.constant 0 : i32
    return %c0_i32, %c0_i32_0 : i32, i32
  }
  func.func @transform_9(%arg0: i32) -> (i32, i32) {
    %c0_i32 = arith.constant 0 : i32
    %c0_i32_0 = arith.constant 0 : i32
    %c0_i32_1 = arith.constant 0 : i32
    return %c0_i32, %c0_i32_0 : i32, i32
  }
  func.func @transform_10(%arg0: i32) -> (i32, i32, i32) {
    %c0_i32 = arith.constant 0 : i32
    %c0_i32_0 = arith.constant 0 : i32
    %c0_i32_1 = arith.constant 0 : i32
    return %arg0, %c0_i32, %c0_i32_0 : i32, i32, i32
  }
}

</mosaic_0001>

<llo_original>
// kernel: tpu_custom_call.1
$region0: #{tpu_custom_call.1}
  #allocation0 [shape = 'u32[]', space=smem, size = 0x4, offset = 0x4, fixed_abs, tag = 'smem constant byte address 0x4 - core index']
  #allocation1 [shape = 'u32[144,128]{1,0:T(1,128)}', space=vmem, size = 0x12000, scoped, tag = 'internal scratch']
  %s0 = inlined_call_operand.vmem [shape: f32[2,3,256], index: 0, kind: input, shape index: {}]
  %s1 = inlined_call_operand.vmem [shape: bf16[8,3], index: 1, kind: input, shape index: {}]
  %s2 = inlined_call_operand.vmem [shape: f32[8,1], index: 2, kind: input, shape index: {}]
  %s3 = inlined_call_operand.vmem [shape: bf16[12,8], index: 3, kind: input, shape index: {}]
  %s4 = inlined_call_operand.vmem [shape: f32[8,1], index: 4, kind: input, shape index: {}]
  %s5 = inlined_call_operand.vmem [shape: f32[256,96], index: 5, kind: input, shape index: {}]
  %s6 = inlined_call_operand.vmem [shape: f32[3,96], index: 6, kind: input, shape index: {}]
  %s7 = inlined_call_operand.vmem [shape: f32[8,96], index: 7, kind: input, shape index: {}]
  %s8 = inlined_call_operand.vmem [shape: f32[96,256], index: 8, kind: input, shape index: {}]
  %s9 = inlined_call_operand.vmem [shape: f32[8,1], index: 9, kind: input, shape index: {}]
  %s10 = inlined_call_operand.hbm [shape: f32[2,8,256], index: 10, kind: output, shape index: {}]
  %s11 = sld [smem:[#allocation0]]
  $region73: #{tpu_custom_call.1} parent=0
    _
  %s13 = ssub.s32 1, %s11
  %s14 = scalar_select 0, %s13, %s11
  $region1: #{tpu_custom_call.1} parent=0
    #allocation2 [shape = 'u8[16384]{0}', space=vmem, size = 0x4000, scoped, tag = 'output window, operand 0']
    #allocation3 [shape = 's32[2]{0}', space=sflag, size = 0x8, scoped, tag = 'scoped memory for tpu_custom_call.1']
    %15 = vsyncpa [#allocation3], 0
    %s16 = scalar_lea.sflag [#allocation3], 1
    %17 = vsyncpa %s16, 0
    loop: start=0, step=1, limit=4
    $region2: #{tpu_custom_call.1} parent=1 // loop_pre_header
      _
    $region3: #{tpu_custom_call.1} parent=1 // loop_header
      %s19 = sphi 0, %s23
      %p20 = scmp.ge.s32.totalorder %s19, 4
      %s29 = sphi 0, %s31
      %s32 = sphi 0, %s29
      %s33 = sphi 0, %s32
      %s49 = sphi 0, %s33
      %s53 = sphi 0, %s53
      %s55 = sphi 0, %s53
      %s56 = sphi 0, %s55
      %s70 = sphi 0, %s56
      %s74 = sphi 0, %s74
      %s76 = sphi 0, %s74
      %s77 = sphi 0, %s76
      %s91 = sphi 0, %s77
      %s95 = sphi 0, %s95
      %s97 = sphi 0, %s95
      %s98 = sphi 0, %s97
      %s112 = sphi 0, %s98
      %s116 = sphi 0, %s116
      %s118 = sphi 0, %s116
      %s119 = sphi 0, %s118
      %s133 = sphi 0, %s119
      %s137 = sphi 0, %s137
      %s139 = sphi 0, %s137
      %s140 = sphi 0, %s139
      %s154 = sphi 0, %s140
      %s158 = sphi 0, %s158
      %s160 = sphi 0, %s158
      %s161 = sphi 0, %s160
      %s175 = sphi 0, %s161
      %s179 = sphi 0, %s179
      %s181 = sphi 0, %s179
      %s182 = sphi 0, %s181
      %s196 = sphi 0, %s182
      %s200 = sphi 0, %s200
      %s202 = sphi 0, %s200
      %s203 = sphi 0, %s202
      %s217 = sphi 0, %s203
      %s221 = sphi 0, %s221
      %s223 = sphi 0, %s221
      %s224 = sphi 0, %s223
      %s238 = sphi 0, %s224
      %s244 = sphi 0, %s246
      %s247 = sphi 0, %s244
      %s248 = sphi 0, %s247
      %s264 = sphi 0, %s248
    $region4: #{tpu_custom_call.1} parent=1 // loop_header_branch
      %22 = sbr.rel (%p20) target = $region8
    $region5: #{tpu_custom_call.1} parent=1 // loop_body
      %s24 = ssub.s32 %s19, 1
      %s25 = ssub.s32 %s19, 2
      %s26 = sadd.s32 %s19, 1
      %s27 = ssub.s32 %s19, %s26
      %p28 = scmp.eq.s32.totalorder %s27, 0
      %s30 = sadd.s32 %s29, 1
      %s31 = scalar_select %p28, %s29, %s30
      %p34 = pneg %p28
      %p35 = scmp.eq.s32.totalorder %s19, 1
      %p36 = por %p34, %p35
      %p37 = scmp.ne.s32.totalorder %s29, %s32
      %p38 = scmp.eq.s32.totalorder %s19, 0
      %p39 = por %p37, %p38
      %p40 = scmp.ne.s32.totalorder %s29, %s32
      %p41 = scmp.eq.s32.totalorder %s24, 1
      %p42 = por %p40, %p41
      %p43 = scmp.ne.s32.totalorder %s32, %s33
      %p44 = scmp.eq.s32.totalorder %s24, 0
      %p45 = por %p43, %p44
      %p46 = scmp.ne.s32.totalorder %s32, %s33
      %p47 = scmp.eq.s32.totalorder %s25, 1
      %p48 = por %p46, %p47
      %p50 = scmp.ne.s32.totalorder %s33, %s49
      %p51 = scmp.eq.s32.totalorder %s25, 0
      %p52 = por %p50, %p51
      %s54 = sadd.s32 %s53, 1
      %p57 = scmp.eq.s32.totalorder %s19, 1
      %p58 = scmp.ne.s32.totalorder %s53, %s55
      %p59 = scmp.eq.s32.totalorder %s19, 0
      %p60 = por %p58, %p59
      %p61 = scmp.ne.s32.totalorder %s53, %s55
      %p62 = scmp.eq.s32.totalorder %s24, 1
      %p63 = por %p61, %p62
      %p64 = scmp.ne.s32.totalorder %s55, %s56
      %p65 = scmp.eq.s32.totalorder %s24, 0
      %p66 = por %p64, %p65
      %p67 = scmp.ne.s32.totalorder %s55, %s56
      %p68 = scmp.eq.s32.totalorder %s25, 1
      %p69 = por %p67, %p68
      %p71 = scmp.ne.s32.totalorder %s56, %s70
      %p72 = scmp.eq.s32.totalorder %s25, 0
      %p73 = por %p71, %p72
      %s75 = sadd.s32 %s74, 1
      %p78 = scmp.eq.s32.totalorder %s19, 1
      %p79 = scmp.ne.s32.totalorder %s74, %s76
      %p80 = scmp.eq.s32.totalorder %s19, 0
      %p81 = por %p79, %p80
      %p82 = scmp.ne.s32.totalorder %s74, %s76
      %p83 = scmp.eq.s32.totalorder %s24, 1
      %p84 = por %p82, %p83
      %p85 = scmp.ne.s32.totalorder %s76, %s77
      %p86 = scmp.eq.s32.totalorder %s24, 0
      %p87 = por %p85, %p86
      %p88 = scmp.ne.s32.totalorder %s76, %s77
      %p89 = scmp.eq.s32.totalorder %s25, 1
      %p90 = por %p88, %p89
      %p92 = scmp.ne.s32.totalorder %s77, %s91
      %p93 = scmp.eq.s32.totalorder %s25, 0
      %p94 = por %p92, %p93
      %s96 = sadd.s32 %s95, 1
      %p99 = scmp.eq.s32.totalorder %s19, 1
      %p100 = scmp.ne.s32.totalorder %s95, %s97
      %p101 = scmp.eq.s32.totalorder %s19, 0
      %p102 = por %p100, %p101
      %p103 = scmp.ne.s32.totalorder %s95, %s97
      %p104 = scmp.eq.s32.totalorder %s24, 1
      %p105 = por %p103, %p104
      %p106 = scmp.ne.s32.totalorder %s97, %s98
      %p107 = scmp.eq.s32.totalorder %s24, 0
      %p108 = por %p106, %p107
      %p109 = scmp.ne.s32.totalorder %s97, %s98
      %p110 = scmp.eq.s32.totalorder %s25, 1
      %p111 = por %p109, %p110
      %p113 = scmp.ne.s32.totalorder %s98, %s112
      %p114 = scmp.eq.s32.totalorder %s25, 0
      %p115 = por %p113, %p114
      %s117 = sadd.s32 %s116, 1
      %p120 = scmp.eq.s32.totalorder %s19, 1
      %p121 = scmp.ne.s32.totalorder %s116, %s118
      %p122 = scmp.eq.s32.totalorder %s19, 0
      %p123 = por %p121, %p122
      %p124 = scmp.ne.s32.totalorder %s116, %s118
      %p125 = scmp.eq.s32.totalorder %s24, 1
      %p126 = por %p124, %p125
      %p127 = scmp.ne.s32.totalorder %s118, %s119
      %p128 = scmp.eq.s32.totalorder %s24, 0
      %p129 = por %p127, %p128
      %p130 = scmp.ne.s32.totalorder %s118, %s119
      %p131 = scmp.eq.s32.totalorder %s25, 1
      %p132 = por %p130, %p131
      %p134 = scmp.ne.s32.totalorder %s119, %s133
      %p135 = scmp.eq.s32.totalorder %s25, 0
      %p136 = por %p134, %p135
      %s138 = sadd.s32 %s137, 1
      %p141 = scmp.eq.s32.totalorder %s19, 1
      %p142 = scmp.ne.s32.totalorder %s137, %s139
      %p143 = scmp.eq.s32.totalorder %s19, 0
      %p144 = por %p142, %p143
      %p145 = scmp.ne.s32.totalorder %s137, %s139
      %p146 = scmp.eq.s32.totalorder %s24, 1
      %p147 = por %p145, %p146
      %p148 = scmp.ne.s32.totalorder %s139, %s140
      %p149 = scmp.eq.s32.totalorder %s24, 0
      %p150 = por %p148, %p149
      %p151 = scmp.ne.s32.totalorder %s139, %s140
      %p152 = scmp.eq.s32.totalorder %s25, 1
      %p153 = por %p151, %p152
      %p155 = scmp.ne.s32.totalorder %s140, %s154
      %p156 = scmp.eq.s32.totalorder %s25, 0
      %p157 = por %p155, %p156
      %s159 = sadd.s32 %s158, 1
      %p162 = scmp.eq.s32.totalorder %s19, 1
      %p163 = scmp.ne.s32.totalorder %s158, %s160
      %p164 = scmp.eq.s32.totalorder %s19, 0
      %p165 = por %p163, %p164
      %p166 = scmp.ne.s32.totalorder %s158, %s160
      %p167 = scmp.eq.s32.totalorder %s24, 1
      %p168 = por %p166, %p167
      %p169 = scmp.ne.s32.totalorder %s160, %s161
      %p170 = scmp.eq.s32.totalorder %s24, 0
      %p171 = por %p169, %p170
      %p172 = scmp.ne.s32.totalorder %s160, %s161
      %p173 = scmp.eq.s32.totalorder %s25, 1
      %p174 = por %p172, %p173
      %p176 = scmp.ne.s32.totalorder %s161, %s175
      %p177 = scmp.eq.s32.totalorder %s25, 0
      %p178 = por %p176, %p177
      %s180 = sadd.s32 %s179, 1
      %p183 = scmp.eq.s32.totalorder %s19, 1
      %p184 = scmp.ne.s32.totalorder %s179, %s181
      %p185 = scmp.eq.s32.totalorder %s19, 0
      %p186 = por %p184, %p185
      %p187 = scmp.ne.s32.totalorder %s179, %s181
      %p188 = scmp.eq.s32.totalorder %s24, 1
      %p189 = por %p187, %p188
      %p190 = scmp.ne.s32.totalorder %s181, %s182
      %p191 = scmp.eq.s32.totalorder %s24, 0
      %p192 = por %p190, %p191
      %p193 = scmp.ne.s32.totalorder %s181, %s182
      %p194 = scmp.eq.s32.totalorder %s25, 1
      %p195 = por %p193, %p194
      %p197 = scmp.ne.s32.totalorder %s182, %s196
      %p198 = scmp.eq.s32.totalorder %s25, 0
      %p199 = por %p197, %p198
      %s201 = sadd.s32 %s200, 1
      %p204 = scmp.eq.s32.totalorder %s19, 1
      %p205 = scmp.ne.s32.totalorder %s200, %s202
      %p206 = scmp.eq.s32.totalorder %s19, 0
      %p207 = por %p205, %p206
      %p208 = scmp.ne.s32.totalorder %s200, %s202
      %p209 = scmp.eq.s32.totalorder %s24, 1
      %p210 = por %p208, %p209
      %p211 = scmp.ne.s32.totalorder %s202, %s203
      %p212 = scmp.eq.s32.totalorder %s24, 0
      %p213 = por %p211, %p212
      %p214 = scmp.ne.s32.totalorder %s202, %s203
      %p215 = scmp.eq.s32.totalorder %s25, 1
      %p216 = por %p214, %p215
      %p218 = scmp.ne.s32.totalorder %s203, %s217
      %p219 = scmp.eq.s32.totalorder %s25, 0
      %p220 = por %p218, %p219
      %s222 = sadd.s32 %s221, 1
      %p225 = scmp.eq.s32.totalorder %s19, 1
      %p226 = scmp.ne.s32.totalorder %s221, %s223
      %p227 = scmp.eq.s32.totalorder %s19, 0
      %p228 = por %p226, %p227
      %p229 = scmp.ne.s32.totalorder %s221, %s223
      %p230 = scmp.eq.s32.totalorder %s24, 1
      %p231 = por %p229, %p230
      %p232 = scmp.ne.s32.totalorder %s223, %s224
      %p233 = scmp.eq.s32.totalorder %s24, 0
      %p234 = por %p232, %p233
      %p235 = scmp.ne.s32.totalorder %s223, %s224
      %p236 = scmp.eq.s32.totalorder %s25, 1
      %p237 = por %p235, %p236
      %p239 = scmp.ne.s32.totalorder %s224, %s238
      %p240 = scmp.eq.s32.totalorder %s25, 0
      %p241 = por %p239, %p240
      %s242 = ssub.s32 %s19, %s26
      %p243 = scmp.eq.s32.totalorder %s242, 0
      %s245 = sadd.s32 %s244, 1
      %s246 = scalar_select %p243, %s244, %s245
      %p249 = pneg %p243
      %p250 = scmp.eq.s32.totalorder %s19, 1
      %p251 = por %p249, %p250
      %p252 = scmp.ne.s32.totalorder %s244, %s247
      %p253 = scmp.eq.s32.totalorder %s19, 0
      %p254 = por %p252, %p253
      %p255 = scmp.ne.s32.totalorder %s244, %s247
      %p256 = scmp.eq.s32.totalorder %s24, 1
      %p257 = por %p255, %p256
      %p258 = scmp.ne.s32.totalorder %s247, %s248
      %p259 = scmp.eq.s32.totalorder %s24, 0
      %p260 = por %p258, %p259
      %p261 = scmp.ne.s32.totalorder %s247, %s248
      %p262 = scmp.eq.s32.totalorder %s25, 1
      %p263 = por %p261, %p262
      %p265 = scmp.ne.s32.totalorder %s248, %s264
      %p266 = scmp.eq.s32.totalorder %s25, 0
      %p267 = por %p265, %p266
      %p268 = scmp.le.s32.totalorder 1, %s19
      %p269 = scmp.lt.s32.totalorder %s19, 3
      %p270 = pnand %p268, %p269
      %p271 = pneg %p270
      // Predicated region
      $region9: #{tpu_custom_call.1} parent=5 // pred_check
        _
      $region10: #{tpu_custom_call.1} parent=5 // pred_check_branch
        %273 = sbr.rel (%p270) target = $region12
      $region11: #{tpu_custom_call.1} parent=5 // pred_region
        %s274 = ssub.s32 %s19, 1
        // Predicated region
        $region13: #{tpu_custom_call.1} parent=11 // pred_check
          %p275 = pneg %p66
        $region14: #{tpu_custom_call.1} parent=11 // pred_check_branch
          %277 = sbr.rel (%p275) target = $region16
        $region15: #{tpu_custom_call.1} parent=11 // pred_region
          _
        $region16: #{tpu_custom_call.1} parent=11 // pred_fallthru
          _
        // Predicated region
        $region17: #{tpu_custom_call.1} parent=11 // pred_check
          %p278 = pneg %p87
        $region18: #{tpu_custom_call.1} parent=11 // pred_check_branch
          %280 = sbr.rel (%p278) target = $region20
        $region19: #{tpu_custom_call.1} parent=11 // pred_region
          _
        $region20: #{tpu_custom_call.1} parent=11 // pred_fallthru
          _
        // Predicated region
        $region21: #{tpu_custom_call.1} parent=11 // pred_check
          %p281 = pneg %p108
        $region22: #{tpu_custom_call.1} parent=11 // pred_check_branch
          %283 = sbr.rel (%p281) target = $region24
        $region23: #{tpu_custom_call.1} parent=11 // pred_region
          _
        $region24: #{tpu_custom_call.1} parent=11 // pred_fallthru
          _
        // Predicated region
        $region25: #{tpu_custom_call.1} parent=11 // pred_check
          %p284 = pneg %p129
        $region26: #{tpu_custom_call.1} parent=11 // pred_check_branch
          %286 = sbr.rel (%p284) target = $region28
        $region27: #{tpu_custom_call.1} parent=11 // pred_region
          _
        $region28: #{tpu_custom_call.1} parent=11 // pred_fallthru
          _
        // Predicated region
        $region29: #{tpu_custom_call.1} parent=11 // pred_check
          %p287 = pneg %p150
        $region30: #{tpu_custom_call.1} parent=11 // pred_check_branch
          %289 = sbr.rel (%p287) target = $region32
        $region31: #{tpu_custom_call.1} parent=11 // pred_region
          _
        $region32: #{tpu_custom_call.1} parent=11 // pred_fallthru
          _
        // Predicated region
        $region33: #{tpu_custom_call.1} parent=11 // pred_check
          %p290 = pneg %p171
        $region34: #{tpu_custom_call.1} parent=11 // pred_check_branch
          %292 = sbr.rel (%p290) target = $region36
        $region35: #{tpu_custom_call.1} parent=11 // pred_region
          _
        $region36: #{tpu_custom_call.1} parent=11 // pred_fallthru
          _
        // Predicated region
        $region37: #{tpu_custom_call.1} parent=11 // pred_check
          %p293 = pneg %p192
        $region38: #{tpu_custom_call.1} parent=11 // pred_check_branch
          %295 = sbr.rel (%p293) target = $region40
        $region39: #{tpu_custom_call.1} parent=11 // pred_region
          _
        $region40: #{tpu_custom_call.1} parent=11 // pred_fallthru
          _
        // Predicated region
        $region41: #{tpu_custom_call.1} parent=11 // pred_check
          %p296 = pneg %p213
        $region42: #{tpu_custom_call.1} parent=11 // pred_check_branch
          %298 = sbr.rel (%p296) target = $region44
        $region43: #{tpu_custom_call.1} parent=11 // pred_region
          _
        $region44: #{tpu_custom_call.1} parent=11 // pred_fallthru
          _
        // Predicated region
        $region45: #{tpu_custom_call.1} parent=11 // pred_check
          %p299 = pneg %p234
        $region46: #{tpu_custom_call.1} parent=11 // pred_check_branch
          %301 = sbr.rel (%p299) target = $region48
        $region47: #{tpu_custom_call.1} parent=11 // pred_region
          _
        $region48: #{tpu_custom_call.1} parent=11 // pred_fallthru
          _
      $region12: #{tpu_custom_call.1} parent=5 // pred_fallthru
        _
      %p302 = scmp.lt.s32.totalorder %s19, 2
      // Predicated region
      $region49: #{tpu_custom_call.1} parent=5 // pred_check
        %p303 = pneg %p302
      $region50: #{tpu_custom_call.1} parent=5 // pred_check_branch
        %305 = sbr.rel (%p303) target = $region52
      $region51: #{tpu_custom_call.1} parent=5 // pred_region
        // Predicated region
        $region53: #{tpu_custom_call.1} parent=51 // pred_check
          %p306 = pneg %p39
        $region54: #{tpu_custom_call.1} parent=51 // pred_check_branch
          %308 = sbr.rel (%p306) target = $region56
        $region55: #{tpu_custom_call.1} parent=51 // pred_region
          %p309 = scmp.lt.s32.totalorder %s19, 1
          %s310 = scalar_select %p309, %s19, 1
          %s311 = smul.addr %s310, 2
          %s312 = smul.addr %s311, 4
          %s313 = scalar_lea.vmem %s0, %s312
        $region56: #{tpu_custom_call.1} parent=51 // pred_fallthru
          _
      $region52: #{tpu_custom_call.1} parent=5 // pred_fallthru
        _
      %p314 = scmp.le.s32.totalorder 1, %s19
      %p315 = scmp.lt.s32.totalorder %s19, 3
      %p316 = pnand %p314, %p315
      %p317 = pneg %p316
      // Predicated region
      $region57: #{tpu_custom_call.1} parent=5 // pred_check
        _
      $region58: #{tpu_custom_call.1} parent=5 // pred_check_branch
        %319 = sbr.rel (%p316) target = $region60
      $region59: #{tpu_custom_call.1} parent=5 // pred_region
        %s320 = ssub.s32 %s19, 1
        %p321 = scmp.lt.s32.totalorder %s24, 1
        %s322 = scalar_select %p321, %s24, 1
        %s323 = smul.addr %s322, 2
        %s324 = smul.addr %s323, 4
        %s325 = scalar_lea.vmem %s0, %s324
        %p326 = pneg %p45
        %p327 = pneg %p42
        %p328 = pneg %p66
        %p329 = pneg %p63
        %p330 = pneg %p87
        %p331 = pneg %p84
        %p332 = pneg %p108
        %p333 = pneg %p105
        %p334 = pneg %p129
        %p335 = pneg %p126
        %p336 = pneg %p150
        %p337 = pneg %p147
        %p338 = pneg %p171
        %p339 = pneg %p168
        %p340 = pneg %p192
        %p341 = pneg %p189
        %p342 = pneg %p213
        %p343 = pneg %p210
        %p344 = pneg %p234
        %p345 = pneg %p231
        %p346 = pneg %p260
        %p347 = pneg %p257
        %s348 = sand.u32 %s247, 1
        %s349 = scalar_lea.sflag [#allocation3], %s348
        %s350 = sand.u32 %s247, 1
        %s351 = smul.addr %s350, 16
        %s352 = scalar_lea.vmem [#allocation2], %s351
        %p353 = scmp.lt.s32.totalorder %s24, 1
        %s354 = scalar_select %p353, %s24, 1
        %s355 = smul.addr %s354, 2
        %s356 = smul.addr %s355, 4
        %s357 = scalar_lea.vmem %s0, %s356
        %v359 = vld [vmem:[%s357] sm:$0x77]
        %v361 = vcombine.high %v359, %v359
        %v363 = vpack.c.bf16 %v359, %v359
        %v364 = vpack.c.bf16 %v361, %v361
        %v365 = vld [vmem:[%s1] sm:$0xf]
        %v366 = vld [vmem:[%s2] sm:$0xff]
        %368 = vset.pattern.permute.xlu0 0
        %369 = vperm.xlu0 %368, %v366
        %v370 = vpop.permute.xlu0 %369
        %vm372 = vcmask 23552
        %v374 = vsel %vm372, %v365, 0
        %vm376 = vcmask 1040384
        %vm377 = vcmask 1041408
        %v378 = vsel %vm376, 4294967295, 65535
        %v379 = vsel %vm377, %v378, 0
        %v381 = vand.u32 %v363, %v379
        %v384 = vand.u32 %v364, %v379
        %386 = vmatprep.subr.bf16.mxu0 0
        %387 = vmatpush1.bf16.msra.mxu0 0
        %388 = vmatprep.subr.bf16.mxu0 0
        %389 = vmatpush1.bf16.msra.mxu0 0
        %390 = vmatprep.subr.bf16.mxu0 0
        %391 = vmatpush1.bf16.msra.mxu0 0
        %392 = vmatprep.subr.bf16.mxu0 0
        %393 = vmatpush1.bf16.msra.mxu0 0
        %394 = vmatprep.subr.bf16.mxu0 0
        %395 = vmatpush1.bf16.msra.mxu0 0
        %396 = vmatprep.subr.bf16.mxu0 0
        %397 = vmatpush1.bf16.msra.mxu0 0
        %398 = vmatprep.subr.bf16.mxu0 0
        %399 = vmatpush1.bf16.msra.mxu0 0
        %400 = vmatprep.subr.bf16.mxu0 %v384
        %401 = vmatpush1.bf16.msra.mxu0 %v381
        %402 = vmatprep.subr.bf16.mxu0 0
        %403 = vmatpush2.bf16.msra.mxu0 0
        %404 = vmatprep.subr.bf16.mxu0 0
        %405 = vmatpush2.bf16.msra.mxu0 0
        %406 = vmatprep.subr.bf16.mxu0 0
        %407 = vmatpush2.bf16.msra.mxu0 0
        %408 = vmatprep.subr.bf16.mxu0 0
        %409 = vmatpush2.bf16.msra.mxu0 0
        %410 = vmatprep.subr.bf16.mxu0 0
        %411 = vmatpush2.bf16.msra.mxu0 0
        %412 = vmatprep.subr.bf16.mxu0 0
        %413 = vmatpush2.bf16.msra.mxu0 0
        %414 = vmatprep.subr.bf16.mxu0 0
        %415 = vmatpush2.bf16.msra.mxu0 0
        %416 = vmatprep.subr.bf16.mxu0 0
        %417 = vmatpush2.bf16.msra.mxu0 0
        %418 = vmatprep.mubr.bf16.mxu0 0
        %419 = vmatmul.mubr.bf16.gmra.mxu0 %v374
        %v420 = vpop.f32.mrf.mxu0
        %v421 = vadd.f32 %v370, %v420
        %v422 = vpop.f32.mrf.mxu0
        %v423 = vadd.f32 %v370, %v422
        %v424 = vpop.f32.mrf.mxu0
        %v425 = vpop.f32.mrf.mxu0
        %426 = vdwg.mxu0
        %v427 = vmax.f32 %v421, 0.0
        %v428 = vmax.f32 %v423, 0.0
        %v429 = vld [vmem:[%s3] sm:$0xf]
        %v430 = vld [vmem:[%s3 + $0x4] sm:$0x3]
        %v431 = vpack.c.bf16 %v427, %v427
        %v432 = vpack.c.bf16 %v428, %v428
        %v435 = vunpack.c.l.b16 %v429
        %v436 = vunpack.c.l.b16 %v430
        %v437 = vpack.c.b16 %v436, %v435
        %vm438 = vcmask 64512
        %v440 = vsel %vm438, %v437, 0
        %vm442 = vcmask 1043456
        %v444 = vsel %vm442, %v431, 0
        %v447 = vsel %vm442, %v432, 0
        %449 = vmatprep.subr.bf16.mxu0 0
        %450 = vmatpush1.bf16.msra.mxu0 0
        %451 = vmatprep.subr.bf16.mxu0 0
        %452 = vmatpush1.bf16.msra.mxu0 0
        %453 = vmatprep.subr.bf16.mxu0 0
        %454 = vmatpush1.bf16.msra.mxu0 0
        %455 = vmatprep.subr.bf16.mxu0 0
        %456 = vmatpush1.bf16.msra.mxu0 0
        %457 = vmatprep.subr.bf16.mxu0 0
        %458 = vmatpush1.bf16.msra.mxu0 0
        %459 = vmatprep.subr.bf16.mxu0 0
        %460 = vmatpush1.bf16.msra.mxu0 0
        %461 = vmatprep.subr.bf16.mxu0 0
        %462 = vmatpush1.bf16.msra.mxu0 0
        %463 = vmatprep.subr.bf16.mxu0 %v447
        %464 = vmatpush1.bf16.msra.mxu0 %v444
        %465 = vmatprep.subr.bf16.mxu0 0
        %466 = vmatpush2.bf16.msra.mxu0 0
        %467 = vmatprep.subr.bf16.mxu0 0
        %468 = vmatpush2.bf16.msra.mxu0 0
        %469 = vmatprep.subr.bf16.mxu0 0
        %470 = vmatpush2.bf16.msra.mxu0 0
        %471 = vmatprep.subr.bf16.mxu0 0
        %472 = vmatpush2.bf16.msra.mxu0 0
        %473 = vmatprep.subr.bf16.mxu0 0
        %474 = vmatpush2.bf16.msra.mxu0 0
        %475 = vmatprep.subr.bf16.mxu0 0
        %476 = vmatpush2.bf16.msra.mxu0 0
        %477 = vmatprep.subr.bf16.mxu0 0
        %478 = vmatpush2.bf16.msra.mxu0 0
        %479 = vmatprep.subr.bf16.mxu0 0
        %480 = vmatpush2.bf16.msra.mxu0 0
        %481 = vmatprep.mubr.bf16.mxu0 0
        %482 = vmatmul.mubr.bf16.gmra.mxu0 %v440
        %v483 = vpop.f32.mrf.mxu0
        %v484 = vadd.f32 0.0, %v483
        %v485 = vpop.f32.mrf.mxu0
        %v486 = vadd.f32 0.0, %v485
        %v487 = vpop.f32.mrf.mxu0
        %v488 = vadd.f32 0.0, %v487
        %v489 = vpop.f32.mrf.mxu0
        %v490 = vadd.f32 0.0, %v489
        %491 = vdwg.mxu0
        %v492 = vld [vmem:[%s5] sm:$0xff]
        %v493 = vld [vmem:[%s5 + $0x8] sm:$0xff]
        %v494 = vld [vmem:[%s5 + $0x10] sm:$0xff]
        %v495 = vld [vmem:[%s5 + $0x18] sm:$0xff]
        %v496 = vld [vmem:[%s5 + $0x20] sm:$0xff]
        %v497 = vld [vmem:[%s5 + $0x28] sm:$0xff]
        %v498 = vld [vmem:[%s5 + $0x30] sm:$0xff]
        %v499 = vld [vmem:[%s5 + $0x38] sm:$0xff]
        %v500 = vld [vmem:[%s5 + $0x40] sm:$0xff]
        %v501 = vld [vmem:[%s5 + $0x48] sm:$0xff]
        %v502 = vld [vmem:[%s5 + $0x50] sm:$0xff]
        %v503 = vld [vmem:[%s5 + $0x58] sm:$0xff]
        %v504 = vld [vmem:[%s5 + $0x60] sm:$0xff]
        %v505 = vld [vmem:[%s5 + $0x68] sm:$0xff]
        %v506 = vld [vmem:[%s5 + $0x70] sm:$0xff]
        %v507 = vld [vmem:[%s5 + $0x78] sm:$0xff]
        %v508 = vld [vmem:[%s5 + $0x80] sm:$0xff]
        %v509 = vld [vmem:[%s5 + $0x88] sm:$0xff]
        %v510 = vld [vmem:[%s5 + $0x90] sm:$0xff]
        %v511 = vld [vmem:[%s5 + $0x98] sm:$0xff]
        %v512 = vld [vmem:[%s5 + $0xa0] sm:$0xff]
        %v513 = vld [vmem:[%s5 + $0xa8] sm:$0xff]
        %v514 = vld [vmem:[%s5 + $0xb0] sm:$0xff]
        %v515 = vld [vmem:[%s5 + $0xb8] sm:$0xff]
        %v516 = vld [vmem:[%s5 + $0xc0] sm:$0xff]
        %v517 = vld [vmem:[%s5 + $0xc8] sm:$0xff]
        %v518 = vld [vmem:[%s5 + $0xd0] sm:$0xff]
        %v519 = vld [vmem:[%s5 + $0xd8] sm:$0xff]
        %v520 = vld [vmem:[%s5 + $0xe0] sm:$0xff]
        %v521 = vld [vmem:[%s5 + $0xe8] sm:$0xff]
        %v522 = vld [vmem:[%s5 + $0xf0] sm:$0xff]
        %v523 = vld [vmem:[%s5 + $0xf8] sm:$0xff]
        %v526 = vrot.slane %v488, 1
        %v527 = vrot.slane %v490, 1
        %530 = vmatprep.subr.mxu0 0.0
        %531 = vmatpush1.msra.mxu0 %v507
        %532 = vmatprep.subr.mxu0 0.0
        %533 = vmatpush1.msra.mxu0 %v506
        %534 = vmatprep.subr.mxu0 0.0
        %535 = vmatpush1.msra.mxu0 %v505
        %536 = vmatprep.subr.mxu0 0.0
        %537 = vmatpush1.msra.mxu0 %v504
        %538 = vmatprep.subr.mxu0 0.0
        %539 = vmatpush1.msra.mxu0 %v503
        %540 = vmatprep.subr.mxu0 0.0
        %541 = vmatpush1.msra.mxu0 %v502
        %542 = vmatprep.subr.mxu0 0.0
        %543 = vmatpush1.msra.mxu0 %v501
        %544 = vmatprep.subr.mxu0 0.0
        %545 = vmatpush1.msra.mxu0 %v500
        %546 = vmatprep.subr.mxu0 0.0
        %547 = vmatpush1.msra.mxu0 %v499
        %548 = vmatprep.subr.mxu0 0.0
        %549 = vmatpush1.msra.mxu0 %v498
        %550 = vmatprep.subr.mxu0 0.0
        %551 = vmatpush1.msra.mxu0 %v497
        %552 = vmatprep.subr.mxu0 0.0
        %553 = vmatpush1.msra.mxu0 %v496
        %554 = vmatprep.subr.mxu0 0.0
        %555 = vmatpush1.msra.mxu0 %v495
        %556 = vmatprep.subr.mxu0 0.0
        %557 = vmatpush1.msra.mxu0 %v494
        %558 = vmatprep.subr.mxu0 0.0
        %559 = vmatpush1.msra.mxu0 %v493
        %560 = vmatprep.subr.mxu0 0.0
        %561 = vmatpush1.msra.mxu0 %v492
        %562 = vmatprep.subr.mxu0 0.0
        %563 = vmatpush2.msra.mxu0 %v523
        %564 = vmatprep.subr.mxu0 0.0
        %565 = vmatpush2.msra.mxu0 %v522
        %566 = vmatprep.subr.mxu0 0.0
        %567 = vmatpush2.msra.mxu0 %v521
        %568 = vmatprep.subr.mxu0 0.0
        %569 = vmatpush2.msra.mxu0 %v520
        %570 = vmatprep.subr.mxu0 0.0
        %571 = vmatpush2.msra.mxu0 %v519
        %572 = vmatprep.subr.mxu0 0.0
        %573 = vmatpush2.msra.mxu0 %v518
        %574 = vmatprep.subr.mxu0 0.0
        %575 = vmatpush2.msra.mxu0 %v517
        %576 = vmatprep.subr.mxu0 0.0
        %577 = vmatpush2.msra.mxu0 %v516
        %578 = vmatprep.subr.mxu0 0.0
        %579 = vmatpush2.msra.mxu0 %v515
        %580 = vmatprep.subr.mxu0 0.0
        %581 = vmatpush2.msra.mxu0 %v514
        %582 = vmatprep.subr.mxu0 0.0
        %583 = vmatpush2.msra.mxu0 %v513
        %584 = vmatprep.subr.mxu0 0.0
        %585 = vmatpush2.msra.mxu0 %v512
        %586 = vmatprep.subr.mxu0 0.0
        %587 = vmatpush2.msra.mxu0 %v511
        %588 = vmatprep.subr.mxu0 0.0
        %589 = vmatpush2.msra.mxu0 %v510
        %590 = vmatprep.subr.mxu0 0.0
        %591 = vmatpush2.msra.mxu0 %v509
        %592 = vmatprep.subr.mxu0 0.0
        %593 = vmatpush2.msra.mxu0 %v508
        %594 = vmatprep.mubr.f32.mxu0 %v527
        %595 = vmatmul.mubr.f32.gmra.mxu0 %v526
        %v596 = vpop.f32.mrf.mxu0
        %v597 = vadd.f32 0.0, %v596
        %v598 = vpop.f32.mrf.mxu0
        %599 = vdwg.mxu0
        %v600 = vld [vmem:[%s6] sm:$0x7]
        %v601 = vmul.f32 %v597, %v600
        %vm602 = vcmask 780288
        %v603 = vsel %vm602, %v601, 0.0
        %v604 = vrot.slane %v603, 4
        %v605 = vadd.f32 %v603, %v604
        %v606 = vrot.slane %v605, 2
        %v607 = vadd.f32 %v605, %v606
        %v608 = vrot.slane %v607, 1
        %v609 = vadd.f32 %v607, %v608
        %v610 = vld [vmem:[%s7] sm:$0xff]
        %v611 = vmul.f32 %v610, %v609
        %v612 = vld [vmem:[%s8] sm:$0xff]
        %v613 = vld [vmem:[%s8 + $0x8] sm:$0xff]
        %v614 = vld [vmem:[%s8 + $0x10] sm:$0xff]
        %v615 = vld [vmem:[%s8 + $0x18] sm:$0xff]
        %v616 = vld [vmem:[%s8 + $0x20] sm:$0xff]
        %v617 = vld [vmem:[%s8 + $0x28] sm:$0xff]
        %v618 = vld [vmem:[%s8 + $0x30] sm:$0xff]
        %v619 = vld [vmem:[%s8 + $0x38] sm:$0xff]
        %v620 = vld [vmem:[%s8 + $0x40] sm:$0xff]
        %v621 = vld [vmem:[%s8 + $0x48] sm:$0xff]
        %v622 = vld [vmem:[%s8 + $0x50] sm:$0xff]
        %v623 = vld [vmem:[%s8 + $0x58] sm:$0xff]
        %v624 = vld [vmem:[%s8 + $0x60] sm:$0xff]
        %v625 = vld [vmem:[%s8 + $0x68] sm:$0xff]
        %v626 = vld [vmem:[%s8 + $0x70] sm:$0xff]
        %v627 = vld [vmem:[%s8 + $0x78] sm:$0xff]
        %v628 = vld [vmem:[%s8 + $0x80] sm:$0xff]
        %v629 = vld [vmem:[%s8 + $0x88] sm:$0xff]
        %v630 = vld [vmem:[%s8 + $0x90] sm:$0xff]
        %v631 = vld [vmem:[%s8 + $0x98] sm:$0xff]
        %v632 = vld [vmem:[%s8 + $0xa0] sm:$0xff]
        %v633 = vld [vmem:[%s8 + $0xa8] sm:$0xff]
        %v634 = vld [vmem:[%s8 + $0xb0] sm:$0xff]
        %v635 = vld [vmem:[%s8 + $0xb8] sm:$0xff]
        %vm636 = vcmask 785408
        %v638 = vsel %vm636, %v611, 0
        %640 = vmatprep.subr.mxu0 0.0
        %641 = vmatpush1.msra.mxu0 0.0
        %642 = vmatprep.subr.mxu0 0.0
        %643 = vmatpush1.msra.mxu0 0.0
        %644 = vmatprep.subr.mxu0 0.0
        %645 = vmatpush1.msra.mxu0 0.0
        %646 = vmatprep.subr.mxu0 0.0
        %647 = vmatpush1.msra.mxu0 0.0
        %648 = vmatprep.subr.mxu0 %v635
        %649 = vmatpush1.msra.mxu0 %v634
        %650 = vmatprep.subr.mxu0 %v633
        %651 = vmatpush1.msra.mxu0 %v632
        %652 = vmatprep.subr.mxu0 %v631
        %653 = vmatpush1.msra.mxu0 %v630
        %654 = vmatprep.subr.mxu0 %v629
        %655 = vmatpush1.msra.mxu0 %v628
        %656 = vmatprep.subr.mxu0 %v627
        %657 = vmatpush1.msra.mxu0 %v626
        %658 = vmatprep.subr.mxu0 %v625
        %659 = vmatpush1.msra.mxu0 %v624
        %660 = vmatprep.subr.mxu0 %v623
        %661 = vmatpush1.msra.mxu0 %v622
        %662 = vmatprep.subr.mxu0 %v621
        %663 = vmatpush1.msra.mxu0 %v620
        %664 = vmatprep.subr.mxu0 %v619
        %665 = vmatpush1.msra.mxu0 %v618
        %666 = vmatprep.subr.mxu0 %v617
        %667 = vmatpush1.msra.mxu0 %v616
        %668 = vmatprep.subr.mxu0 %v615
        %669 = vmatpush1.msra.mxu0 %v614
        %670 = vmatprep.subr.mxu0 %v613
        %671 = vmatpush1.msra.mxu0 %v612
        %672 = vmatprep.subr.mxu0 0.0
        %673 = vmatpush2.msra.mxu0 0.0
        %674 = vmatprep.subr.mxu0 0.0
        %675 = vmatpush2.msra.mxu0 0.0
        %676 = vmatprep.subr.mxu0 0.0
        %677 = vmatpush2.msra.mxu0 0.0
        %678 = vmatprep.subr.mxu0 0.0
        %679 = vmatpush2.msra.mxu0 0.0
        %680 = vmatprep.subr.mxu0 0.0
        %681 = vmatpush2.msra.mxu0 0.0
        %682 = vmatprep.subr.mxu0 0.0
        %683 = vmatpush2.msra.mxu0 0.0
        %684 = vmatprep.subr.mxu0 0.0
        %685 = vmatpush2.msra.mxu0 0.0
        %686 = vmatprep.subr.mxu0 0.0
        %687 = vmatpush2.msra.mxu0 0.0
        %688 = vmatprep.subr.mxu0 0.0
        %689 = vmatpush2.msra.mxu0 0.0
        %690 = vmatprep.subr.mxu0 0.0
        %691 = vmatpush2.msra.mxu0 0.0
        %692 = vmatprep.subr.mxu0 0.0
        %693 = vmatpush2.msra.mxu0 0.0
        %694 = vmatprep.subr.mxu0 0.0
        %695 = vmatpush2.msra.mxu0 0.0
        %696 = vmatprep.subr.mxu0 0.0
        %697 = vmatpush2.msra.mxu0 0.0
        %698 = vmatprep.subr.mxu0 0.0
        %699 = vmatpush2.msra.mxu0 0.0
        %700 = vmatprep.subr.mxu0 0.0
        %701 = vmatpush2.msra.mxu0 0.0
        %702 = vmatprep.subr.mxu0 0.0
        %703 = vmatpush2.msra.mxu0 0.0
        %704 = vmatprep.mubr.f32.mxu0 0.0
        %705 = vmatmul.mubr.f32.gmra.mxu0 %v638
        %v706 = vpop.f32.mrf.mxu0
        %v707 = vadd.f32 0.0, %v706
        %v708 = vpop.f32.mrf.mxu0
        %v709 = vadd.f32 0.0, %v708
        %710 = vdwg.mxu0
        %v711 = vld [vmem:[%s4] sm:$0xff]
        %713 = vset.pattern.permute.xlu0 0
        %714 = vperm.xlu0 %713, %v711
        %v715 = vpop.permute.xlu0 %714
        %v717 = vlaneseq
        %v718 = vshrl.u32 %v717, 7
        %v719 = vsub.s32 0, %v718
        %v720 = vrot.slane %v488, %v719
        %v721 = vlaneseq
        %v722 = vshrl.u32 %v721, 7
        %v723 = vsub.s32 0, %v722
        %v724 = vrot.slane %v490, %v723
        %v725 = vmul.f32 %v715, %v720
        %v726 = vmul.f32 %v715, %v724
        %v727 = vadd.f32 %v484, %v725
        %v728 = vadd.f32 %v486, %v726
        %v729 = vadd.f32 %v727, %v707
        %v730 = vadd.f32 %v728, %v709
        %v731 = vld [vmem:[%s9] sm:$0xff]
        %733 = vset.pattern.permute.xlu0 0
        %734 = vperm.xlu0 %733, %v731
        %v735 = vpop.permute.xlu0 %734
        %v737 = vadd.f32 %v729, %v735
        %v738 = vadd.f32 %v730, %v735
        %739 = vst [vmem:[%s352] sm:$0xff] %v737
        %740 = vst [vmem:[%s352 + $0x8] sm:$0xff] %v738
        %s741 = sand.u32 %s247, 1
        %s742 = scalar_lea.sflag [#allocation3], %s741
        %s743 = sand.u32 %s247, 1
        %s744 = smul.addr %s743, 16
        %s745 = scalar_lea.vmem [#allocation2], %s744
        // Predicated region
        $region61: #{tpu_custom_call.1} parent=59 // pred_check
          %p746 = pneg %p257
        $region62: #{tpu_custom_call.1} parent=59 // pred_check_branch
          %748 = sbr.rel (%p746) target = $region64
        $region63: #{tpu_custom_call.1} parent=59 // pred_region
          %s750 = ssub.s32 256, 256
          %751 = vsyncadd %s742, %s750
          %s752 = smul.addr %s24, 2
          %s753 = smul.addr %s752, 128
          %s754 = scalar_lea.hbm %s10, %s753
          %s756 = sshll.u32 %s745, 4
          %s757 = int_to_ptr.vmem [resolvable:$true] %s756
          %759 = dma.vmem_to_hbm [thread:$0]  %s757, 256, %s754, %s742
        $region64: #{tpu_custom_call.1} parent=59 // pred_fallthru
          _
      $region60: #{tpu_custom_call.1} parent=5 // pred_fallthru
        _
      %p760 = scmp.le.s32.totalorder 2, %s19
      // Predicated region
      $region65: #{tpu_custom_call.1} parent=5 // pred_check
        %p761 = pneg %p760
      $region66: #{tpu_custom_call.1} parent=5 // pred_check_branch
        %763 = sbr.rel (%p761) target = $region68
      $region67: #{tpu_custom_call.1} parent=5 // pred_region
        %s764 = ssub.s32 %s19, 2
        // Predicated region
        $region69: #{tpu_custom_call.1} parent=67 // pred_check
          %p765 = pneg %p263
        $region70: #{tpu_custom_call.1} parent=67 // pred_check_branch
          %767 = sbr.rel (%p765) target = $region72
        $region71: #{tpu_custom_call.1} parent=67 // pred_region
          %s768 = sand.u32 %s248, 1
          %s769 = scalar_lea.sflag [#allocation3], %s768
          %s770 = sand.u32 %s248, 1
          %s771 = smul.addr %s770, 16
          %s772 = scalar_lea.vmem [#allocation2], %s771
          %773 = dma.done %s769, 256
        $region72: #{tpu_custom_call.1} parent=67 // pred_fallthru
          _
      $region68: #{tpu_custom_call.1} parent=5 // pred_fallthru
        _
    $region6: #{tpu_custom_call.1} parent=1 // loop_footer
      %s23 = sadd.s32 1, %s19
    $region7: #{tpu_custom_call.1} parent=1 // loop_footer_branch
      %18 = sbr.rel target = $region3
    $region8: #{tpu_custom_call.1} parent=1 // loop_exit
      _
    %774 = vsyncpa [#allocation3], 1
    %s775 = scalar_lea.sflag [#allocation3], 1
    %776 = vsyncpa %s775, 1

</llo_original>
